<compile_context>
chip_gen: v5e
topology: v5e:2x2
jax: 0.10.0
libtpu: 0.0.40
codegen_flags: <defaults>
</compile_context>

<pallas_src>
from typing import Dict, Optional

import jax
import jax.numpy as jnp
from jax.experimental import pallas as pl
from jax.experimental.pallas import tpu as pltpu


_W_RESIDENT_MAX_BYTES = 16 * 1024 * 1024   # keep fused W fully VMEM-resident below this
_K_PAD_MULTIPLE = 128                      # K padding granularity when K-tiling is needed


def _round_up(x: int, m: int) -> int:
    return ((x + m - 1) // m) * m


def _vmem_cap_bytes() -> int:
    """Physical VMEM minus headroom for compiler-internal scratch."""
    phys = 64 * 1024 * 1024
    try:
        phys = int(pltpu.get_tpu_info().vmem_capacity_bytes)
    except Exception:
        pass
    return max(32 * 1024 * 1024, (phys * 7) // 8)


# ----------------------------------------------------------------------------
# Kernels
# ----------------------------------------------------------------------------
def _linear_head_kernel_resident(x_ref, w_ref, b_ref, o_ref):
    """Single K step: W fully resident, no accumulator scratch needed."""
    xv = x_ref[...].astype(w_ref.dtype)   # in-kernel cast: no wrapper HBM pass
    o_ref[...] = (jnp.dot(xv, w_ref[...], preferred_element_type=jnp.float32)
                  + b_ref[...]).astype(o_ref.dtype)


def _linear_head_kernel_ktiled(x_ref, w_ref, b_ref, o_ref, acc_ref):
    """K-reduction variant for very large input_dim (W streamed in K blocks)."""
    k = pl.program_id(1)

    @pl.when(k == 0)
    def _():
        acc_ref[...] = jnp.zeros_like(acc_ref)

    acc_ref[...] += jnp.dot(x_ref[...].astype(w_ref.dtype), w_ref[...],
                            preferred_element_type=jnp.float32)

    @pl.when(k == pl.num_programs(1) - 1)
    def _():
        o_ref[...] = (acc_ref[...] + b_ref[...]).astype(o_ref.dtype)


# ----------------------------------------------------------------------------
# One-time parameter preparation (all per-call-invariant work hoisted here).
# ----------------------------------------------------------------------------
def prepare_fused_params(weights: Dict[str, jnp.ndarray],
                         biases: Dict[str, jnp.ndarray],
                         compute_dtype: Optional[jnp.dtype] = None) -> Dict:
    task_names = list(weights.keys())
    assert list(biases.keys()) == task_names, (
        "weights/biases must have identical task ordering")
    out_dims = [int(weights[t].shape[1]) for t in task_names]
    input_dim = int(weights[task_names[0]].shape[0])
    n_total = sum(out_dims)
    n_pad = _round_up(max(n_total, 1), 128)

    w_cat = jnp.concatenate([weights[t] for t in task_names], axis=1)
    b_cat = jnp.concatenate([biases[t] for t in task_names], axis=0)
    # Zero-pad the fused lane dimension (padded columns are sliced off later).
    w_cat = jnp.pad(w_cat, ((0, 0), (0, n_pad - n_total)))
    b_cat = jnp.pad(b_cat, (0, n_pad - n_total)).reshape(1, n_pad).astype(jnp.float32)

    if compute_dtype is not None:
        # e.g. bf16 on v6e: cast W once here; x is cast per-tile inside the
        # kernel so no extra HBM pass over x is ever issued.
        w_cat = w_cat.astype(compute_dtype)

    w_itemsize = jnp.dtype(w_cat.dtype).itemsize
    w_resident = input_dim * n_pad * w_itemsize <= _W_RESIDENT_MAX_BYTES
    d_pad = input_dim
    if not w_resident:
        # K-tiling will be used; pre-pad W's K dim once so the K tiles can be
        # multiples of 128 that exactly cover the reduction.
        d_pad = _round_up(input_dim, _K_PAD_MULTIPLE)
        if d_pad != input_dim:
            w_cat = jnp.pad(w_cat, ((0, d_pad - input_dim), (0, 0)))

    return dict(w=w_cat, b=b_cat,
                task_names=tuple(task_names), out_dims=tuple(out_dims),
                input_dim=input_dim, n_total=n_total, n_pad=n_pad,
                d_pad=d_pad, w_resident=w_resident)


# ----------------------------------------------------------------------------
# Forward pass.
# ----------------------------------------------------------------------------
def base_head_forward(x: jnp.ndarray,
                      fused: Dict,
                      *,
                      tm: int = 512,
                      tk: int = 2048) -> Dict[str, jnp.ndarray]:
    """Multi-task head forward.

    x:     [batch, input_dim]
    fused: output of prepare_fused_params
    returns {task: [batch, out_dim]}
    """
    B, D = x.shape
    assert D == fused["input_dim"]
    n_pad = fused["n_pad"]
    w = fused["w"]
    b = fused["b"]
    out_dtype = x.dtype

    x_itemsize = jnp.dtype(x.dtype).itemsize
    w_itemsize = jnp.dtype(w.dtype).itemsize
    out_itemsize = jnp.dtype(out_dtype).itemsize
    cap = _vmem_cap_bytes()

    # --- K handling: keep W resident (single K step) whenever it fits -------
    if fused["w_resident"]:
        d_work = D
        k_block = D          # full-dim block: no (8,128) constraint, no x pad
        n_k_tiles = 1
    else:
        d_work = fused["d_pad"]
        # Pick a K tile (multiple of 128) that exactly divides d_work so the
        # reduction never reads a ragged (undefined) K slice of x.
        k_block = 128
        for cand in range(min(_round_up(tk, 128), d_work), 127, -128):
            if d_work % cand == 0:
                k_block = cand
                break
        n_k_tiles = d_work // k_block
        if d_work != D:
            # Rare path (huge, non-128-multiple D): K must be exactly covered;
            # undefined x columns would poison the accumulation (NaN * 0).
            x = jnp.pad(x, ((0, 0), (0, d_work - D)))

    # --- batch tiling: no batch padding; ragged last tile rows are discarded -
    w_alloc = 2 * k_block * n_pad * w_itemsize
    per_row = 2 * (k_block * x_itemsize + n_pad * out_itemsize) + n_pad * 4
    tm_cap = max(8, (int((cap * 3 // 4 - w_alloc) // per_row) // 8) * 8)
    tm = max(8, min(tm, tm_cap))

    if B <= tm:
        tm_eff = B                    # single full-dim block (always legal)
        n_b_tiles = 1
    else:
        n_b_tiles = pl.cdiv(B, tm)
        if n_b_tiles % 2 == 1:
            n_b_tiles += 1            # even tile count -> balances v7x's 2 TCs
        tm_eff = _round_up(pl.cdiv(B, n_b_tiles), 8)
        n_b_tiles = pl.cdiv(B, tm_eff)

    # --- VMEM budget / scheduler hints ---------------------------------------
    vmem_est = (2 * tm_eff * k_block * x_itemsize
                + w_alloc
                + 2 * tm_eff * n_pad * out_itemsize
                + 2 * n_pad * 4
                + (0 if fused["w_resident"] else tm_eff * n_pad * 4))
    vmem_limit = int(min(max(2 * vmem_est, 32 * 1024 * 1024), cap))

    cost = pl.CostEstimate(
        flops=2 * B * d_work * n_pad,
        transcendentals=0,
        bytes_accessed=(B * d_work * x_itemsize
                        + d_work * n_pad * w_itemsize
                        + B * n_pad * out_itemsize
                        + n_pad * 4))

    out_shape = jax.ShapeDtypeStruct((B, n_pad), out_dtype)

    if fused["w_resident"]:
        y = pl.pallas_call(
            _linear_head_kernel_resident,
            out_shape=out_shape,
            grid=(n_b_tiles,),
            in_specs=[
                pl.BlockSpec((tm_eff, D), lambda i: (i, 0)),      # x (streamed)
                pl.BlockSpec((D, n_pad), lambda i: (0, 0)),       # W (resident)
                pl.BlockSpec((1, n_pad), lambda i: (0, 0)),       # bias
            ],
            out_specs=pl.BlockSpec((tm_eff, n_pad), lambda i: (i, 0)),
            compiler_params=pltpu.CompilerParams(
                dimension_semantics=("parallel",),
                vmem_limit_bytes=vmem_limit),
            cost_estimate=cost,
        )(x, w, b)
    else:
        y = pl.pallas_call(
            _linear_head_kernel_ktiled,
            out_shape=out_shape,
            grid=(n_b_tiles, n_k_tiles),
            in_specs=[
                pl.BlockSpec((tm_eff, k_block), lambda i, k: (i, k)),   # x
                pl.BlockSpec((k_block, n_pad), lambda i, k: (k, 0)),    # W
                pl.BlockSpec((1, n_pad), lambda i, k: (0, 0)),          # bias
            ],
            out_specs=pl.BlockSpec((tm_eff, n_pad), lambda i, k: (i, 0)),
            scratch_shapes=[pltpu.VMEM((tm_eff, n_pad), jnp.float32)],
            compiler_params=pltpu.CompilerParams(
                dimension_semantics=("parallel", "arbitrary"),
                vmem_limit_bytes=vmem_limit),
            cost_estimate=cost,
        )(x, w, b)

    # Split the fused (lane-padded) output back into the per-task dict.
    outputs = {}
    off = 0
    for t, d_out in zip(fused["task_names"], fused["out_dims"]):
        outputs[t] = y[:B, off:off + d_out]
        off += d_out
    return outputs


# ----------------------------------------------------------------------------
# Test harness.
# ----------------------------------------------------------------------------
def _init_params(input_dim: int, output_dims: Dict[str, int], key):
    """Deterministic parameter init (mirrors _initialize_layers_base: small
    random weights, zero biases)."""
    weights, biases = {}, {}
    for i, (task, d) in enumerate(output_dims.items()):
        k = jax.random.fold_in(key, i)
        weights[task] = (jax.random.normal(k, (input_dim, d), jnp.float32)
                         * (1.0 / jnp.sqrt(input_dim)))
        biases[task] = jnp.zeros((d,), jnp.float32)
    return weights, biases


def _check(x, weights, biases, output_dims, atol=1e-5, rtol=1e-5):
    fused = prepare_fused_params(weights, biases)
    outs = base_head_forward(x, fused)
    outs = jax.tree_util.tree_map(jax.block_until_ready, outs)
    ok = True
    for t in output_dims:
        ref = x @ weights[t] + biases[t]
        ok = ok and bool(jnp.allclose(outs[t], ref, atol=atol, rtol=rtol))
        ok = ok and outs[t].shape == (x.shape[0], output_dims[t])
    return ok


if __name__ == "__main__":
    key = jax.random.PRNGKey(0)

    # Small shapes consistent with the module's documented interface.
    batch = 2
    input_dim = 32
    output_dims = {"y60_duo": 1, "y30_class": 3}

    kx, kp, kx2, kp2 = jax.random.split(key, 4)
    x = jax.random.normal(kx, (batch, input_dim), jnp.float32)
    weights, biases = _init_params(input_dim, output_dims, kp)
    ok = _check(x, weights, biases, output_dims)

    # Second check exercising batch tiling with a ragged last tile (no x pad).
    batch2, input_dim2 = 1100, 256
    output_dims2 = {"y60_duo": 1, "y30_class": 3, "y5_reg": 7}
    x2 = jax.random.normal(kx2, (batch2, input_dim2), jnp.float32)
    weights2, biases2 = _init_params(input_dim2, output_dims2, kp2)
    ok = ok and _check(x2, weights2, biases2, output_dims2, atol=1e-4, rtol=1e-4)

    if ok:
        print("KERNEL_OK")
    else:
        print("KERNEL_MISMATCH")
</pallas_src>

<mosaic_0001>
module attributes {stable_mosaic.version = 11 : i64} {
  func.func @_linear_head_kernel_resident(%arg0: i32, %arg1: memref<2x32xf32, #tpu.memory_space<vmem>>, %arg2: memref<32x128xf32, #tpu.memory_space<vmem>>, %arg3: memref<1x128xf32, #tpu.memory_space<vmem>>, %arg4: memref<2x128xf32, #tpu.memory_space<vmem>>) attributes {dimension_semantics = [#tpu.dimension_semantics<parallel>], iteration_bounds = array<i64: 1>, scalar_prefetch = 0 : i64, scratch_operands = 0 : i64, tpu.core_type = #tpu.core_type<tc>, window_params = [{transform_indices = @transform_0, window_bounds = array<i64: 2, 32>}, {pipeline_mode = #tpu.pipeline_mode<synchronous>, transform_indices = @transform_1, window_bounds = array<i64: 32, 128>}, {pipeline_mode = #tpu.pipeline_mode<synchronous>, transform_indices = @transform_2, window_bounds = array<i64: 1, 128>}, {transform_indices = @transform_3, window_bounds = array<i64: 2, 128>}]} {
    %c0 = arith.constant 0 : index
    %c0_0 = arith.constant 0 : index
    %0 = vector.load %arg1[%c0, %c0_0] : memref<2x32xf32, #tpu.memory_space<vmem>>, vector<2x32xf32>
    %c0_1 = arith.constant 0 : index
    %c0_2 = arith.constant 0 : index
    %1 = vector.load %arg2[%c0_1, %c0_2] : memref<32x128xf32, #tpu.memory_space<vmem>>, vector<32x128xf32>
    %cst = arith.constant dense<0.000000e+00> : vector<2x128xf32>
    %2 = tpu.matmul %0, %1, %cst {dimension_numbers = #tpu.dot_dimension_numbers<[1], [0], [0], [1], [0, 0, 1, 1], [], []>} : vector<2x32xf32>, vector<32x128xf32>, vector<2x128xf32> -> vector<2x128xf32>
    %c0_3 = arith.constant 0 : index
    %c0_4 = arith.constant 0 : index
    %3 = vector.load %arg3[%c0_3, %c0_4] : memref<1x128xf32, #tpu.memory_space<vmem>>, vector<1x128xf32>
    %4 = vector.broadcast %3 : vector<1x128xf32> to vector<2x128xf32>
    %5 = arith.addf %2, %4 : vector<2x128xf32>
    %c0_5 = arith.constant 0 : index
    %c0_6 = arith.constant 0 : index
    %6 = vector.load %arg4[%c0_5, %c0_6] : memref<2x128xf32, #tpu.memory_space<vmem>>, vector<2x128xf32>
    tpu.vector_store %arg4[%c0_5, %c0_6], %5 {strides = array<i32>} : memref<2x128xf32, #tpu.memory_space<vmem>>, vector<2x128xf32>,
    return
  }
  func.func @transform_0(%arg0: i32) -> (i32, i32) {
    %c0_i32 = arith.constant 0 : i32
    %c0_i32_0 = arith.constant 0 : i32
    return %arg0, %c0_i32 : i32, i32
  }
  func.func @transform_1(%arg0: i32) -> (i32, i32) {
    %c0_i32 = arith.constant 0 : i32
    %c0_i32_0 = arith.constant 0 : i32
    %c0_i32_1 = arith.constant 0 : i32
    return %c0_i32, %c0_i32_0 : i32, i32
  }
  func.func @transform_2(%arg0: i32) -> (i32, i32) {
    %c0_i32 = arith.constant 0 : i32
    %c0_i32_0 = arith.constant 0 : i32
    %c0_i32_1 = arith.constant 0 : i32
    return %c0_i32, %c0_i32_0 : i32, i32
  }
  func.func @transform_3(%arg0: i32) -> (i32, i32) {
    %c0_i32 = arith.constant 0 : i32
    %c0_i32_0 = arith.constant 0 : i32
    return %arg0, %c0_i32 : i32, i32
  }
}

</mosaic_0001>

<llo_original>
// kernel: tpu_custom_call.1
$region0: #{tpu_custom_call.1}
  #allocation0 [shape = 'u32[]', space=smem, size = 0x4, offset = 0x4, fixed_abs, tag = 'smem constant byte address 0x4 - core index']
  #allocation1 [shape = 'u32[72,128]{1,0:T(1,128)}', space=vmem, size = 0x9000, scoped, tag = 'internal scratch']
  %s0 = inlined_call_operand.hbm [shape: f32[2,32], index: 0, kind: input, shape index: {}]
  %s1 = inlined_call_operand.hbm [shape: f32[32,128], index: 1, kind: input, shape index: {}]
  %s2 = inlined_call_operand.vmem [shape: f32[1,128], index: 2, kind: input, shape index: {}]
  %s3 = inlined_call_operand.hbm [shape: f32[2,128], index: 3, kind: output, shape index: {}]
  %s4 = sld [smem:[#allocation0]]
  $region30: #{tpu_custom_call.1} parent=0
    _
  %s6 = ssub.s32 1, %s4
  %s7 = scalar_select 0, %s6, %s4
  $region1: #{tpu_custom_call.1} parent=0
    #allocation2 [shape = 'u8[1024]{0}', space=vmem, size = 0x400, scoped, tag = 'input window, operand 0, single buffered']
    #allocation3 [shape = 's32[1]{0}', space=sflag, size = 0x4, scoped, tag = 'scoped memory for tpu_custom_call.1']
    #allocation4 [shape = 's32[1]{0}', space=sflag, size = 0x4, scoped, tag = 'scoped memory for tpu_custom_call.1']
    #allocation5 [shape = 'u8[16384]{0}', space=vmem, size = 0x4000, scoped, tag = 'input window, operand 1, single buffered']
    #allocation6 [shape = 's32[1]{0}', space=sflag, size = 0x4, scoped, tag = 'scoped memory for tpu_custom_call.1']
    #allocation7 [shape = 'u8[1024]{0}', space=vmem, size = 0x400, scoped, tag = 'output window, operand 0, single buffered']
    %8 = vsyncpa [#allocation3], 0
    %9 = vsyncpa [#allocation6], 0
    %10 = vsyncpa [#allocation4], 0
    // Predicated region
    $region2: #{tpu_custom_call.1} parent=1 // pred_check
      _
    $region3: #{tpu_custom_call.1} parent=1 // pred_check_branch
      %12 = sbr.rel (0) target = $region5
    $region4: #{tpu_custom_call.1} parent=1 // pred_region
      %14 = vsyncadd [#allocation3], 0
      %s16 = sshll.u32 %s0, 4
      %s17 = int_to_ptr.hbm [resolvable:$true] %s16
      %s18 = sshll.u32 [#allocation2], 4
      %s19 = int_to_ptr.vmem [resolvable:$true] %s18
      %21 = dma.hbm_to_vmem [thread:$0]  %s17, 32, %s19, [#allocation3]
    $region5: #{tpu_custom_call.1} parent=1 // pred_fallthru
      _
    // Predicated region
    $region6: #{tpu_custom_call.1} parent=1 // pred_check
      _
    $region7: #{tpu_custom_call.1} parent=1 // pred_check_branch
      %23 = sbr.rel (0) target = $region9
    $region8: #{tpu_custom_call.1} parent=1 // pred_region
      %25 = vsyncadd [#allocation6], 0
      %s26 = sshll.u32 %s1, 4
      %s27 = int_to_ptr.hbm [resolvable:$true] %s26
      %s28 = sshll.u32 [#allocation5], 4
      %s29 = int_to_ptr.vmem [resolvable:$true] %s28
      %34 = dma.hbm_to_vmem [thread:$0]  %s27, 512, %s29, [#allocation6], 128, 128, 8
    $region9: #{tpu_custom_call.1} parent=1 // pred_fallthru
      _
    // Predicated region
    $region10: #{tpu_custom_call.1} parent=1 // pred_check
      _
    $region11: #{tpu_custom_call.1} parent=1 // pred_check_branch
      %36 = sbr.rel (0) target = $region13
    $region12: #{tpu_custom_call.1} parent=1 // pred_region
      _
    $region13: #{tpu_custom_call.1} parent=1 // pred_fallthru
      _
    // Predicated region
    $region14: #{tpu_custom_call.1} parent=1 // pred_check
      _
    $region15: #{tpu_custom_call.1} parent=1 // pred_check_branch
      %38 = sbr.rel (0) target = $region17
    $region16: #{tpu_custom_call.1} parent=1 // pred_region
      %40 = dma.done [#allocation3], 32
    $region17: #{tpu_custom_call.1} parent=1 // pred_fallthru
      _
    // Predicated region
    $region18: #{tpu_custom_call.1} parent=1 // pred_check
      _
    $region19: #{tpu_custom_call.1} parent=1 // pred_check_branch
      %42 = sbr.rel (0) target = $region21
    $region20: #{tpu_custom_call.1} parent=1 // pred_region
      %44 = dma.done [#allocation6], 512
    $region21: #{tpu_custom_call.1} parent=1 // pred_fallthru
      _
    %v45 = vld [vmem:[#allocation2] sm:$0x3]
    %v46 = vld [vmem:[#allocation5] sm:$0xff]
    %v47 = vld [vmem:[#allocation5 + $0x8] sm:$0xff]
    %v48 = vld [vmem:[#allocation5 + $0x10] sm:$0xff]
    %v49 = vld [vmem:[#allocation5 + $0x18] sm:$0xff]
    %v50 = vld [vmem:[%s2] sm:$0x1]
    %v52 = vperm.slane %v50, 0
    %vm54 = vcmask 261120
    %v56 = vsel %vm54, %v45, 0
    %58 = vmatpush.msra.mxu0 0.0
    %59 = vmatpush.msra.mxu0 0.0
    %60 = vmatpush.msra.mxu0 0.0
    %61 = vmatpush.msra.mxu0 0.0
    %62 = vmatpush.msra.mxu0 0.0
    %63 = vmatpush.msra.mxu0 0.0
    %64 = vmatpush.msra.mxu0 0.0
    %65 = vmatpush.msra.mxu0 0.0
    %66 = vmatpush.msra.mxu0 0.0
    %67 = vmatpush.msra.mxu0 0.0
    %68 = vmatpush.msra.mxu0 0.0
    %69 = vmatpush.msra.mxu0 0.0
    %70 = vmatpush.msra.mxu0 %v49
    %71 = vmatpush.msra.mxu0 %v48
    %72 = vmatpush.msra.mxu0 %v47
    %73 = vmatpush.msra.mxu0 %v46
    %74 = vmatmul.f32.gmra.mxu0 %v56
    %v75 = vpop.f32.mrf.mxu0
    %v76 = vadd.f32 %v52, %v75
    %77 = vdwg.mxu0
    %78 = vst [vmem:[#allocation7] sm:$0x3] %v76
    // Predicated region
    $region22: #{tpu_custom_call.1} parent=1 // pred_check
      _
    $region23: #{tpu_custom_call.1} parent=1 // pred_check_branch
      %80 = sbr.rel (0) target = $region25
    $region24: #{tpu_custom_call.1} parent=1 // pred_region
      %82 = vsyncadd [#allocation4], 0
      %s84 = sshll.u32 [#allocation7], 4
      %s85 = int_to_ptr.vmem [resolvable:$true] %s84
      %s86 = sshll.u32 %s3, 4
      %s87 = int_to_ptr.hbm [resolvable:$true] %s86
      %89 = dma.vmem_to_hbm [thread:$0]  %s85, 32, %s87, [#allocation4]
    $region25: #{tpu_custom_call.1} parent=1 // pred_fallthru
      _
    // Predicated region
    $region26: #{tpu_custom_call.1} parent=1 // pred_check
      _
    $region27: #{tpu_custom_call.1} parent=1 // pred_check_branch
      %91 = sbr.rel (0) target = $region29
    $region28: #{tpu_custom_call.1} parent=1 // pred_region
      %93 = dma.done [#allocation4], 32
    $region29: #{tpu_custom_call.1} parent=1 // pred_fallthru
      _
    %94 = vsyncpa [#allocation3], 1
    %95 = vsyncpa [#allocation6], 1
    %96 = vsyncpa [#allocation4], 1

</llo_original>
